<compile_context>
chip_gen: v5e
topology: v5e:2x2
jax: 0.10.0
libtpu: 0.0.40
codegen_flags: <defaults>
</compile_context>

<pallas_src>
import jax
import jax.numpy as jnp
from jax.experimental import pallas as pl
from jax.experimental.pallas import tpu as pltpu


def _round_up(x, m):
    return (x + m - 1) // m * m


def _vmem_limit_bytes():
    """~80% of physical VMEM (leaves headroom for compiler internal scratch)."""
    try:
        cap = int(pltpu.get_tpu_info().vmem_capacity_bytes)
        return int(cap * 0.8)
    except Exception:
        return 48 * 1024 * 1024  # conservative: fits v5e / v6e / v7x


# ---------------------------------------------------------------------------
# Kernels
# ---------------------------------------------------------------------------

def swiglu_resident_kernel(x_ref, w1a_ref, w1b_ref, b1a_ref, b1b_ref,
                           w2_ref, b2_ref, o_ref):
    """Small/medium K: all weights live whole in VMEM; one row slab per grid step."""
    x = x_ref[...].astype(w1a_ref.dtype)          # in-kernel cast (no wrapper pass)
    ha = jnp.dot(x, w1a_ref[...], preferred_element_type=jnp.float32) + b1a_ref[...]
    hb = jnp.dot(x, w1b_ref[...], preferred_element_type=jnp.float32) + b1b_ref[...]
    g = ha * jax.nn.sigmoid(hb)                   # gate math in f32 vregs
    out = jnp.dot(g.astype(w2_ref.dtype), w2_ref[...],
                  preferred_element_type=jnp.float32) + b2_ref[...]
    o_ref[...] = out.astype(o_ref.dtype)


def swiglu_hidden_tiled_kernel(x_ref, w1a_ref, w1b_ref, b1a_ref, b1b_ref,
                               w2_ref, b2_ref, o_ref, acc_ref):
    """Large K: hidden dim tiled on the last (arbitrary) grid axis, f32 accumulator."""
    h = pl.program_id(1)

    @pl.when(h == 0)
    def _():
        acc_ref[...] = jnp.zeros_like(acc_ref)

    x = x_ref[...].astype(w1a_ref.dtype)
    ha = jnp.dot(x, w1a_ref[...], preferred_element_type=jnp.float32) + b1a_ref[...]
    hb = jnp.dot(x, w1b_ref[...], preferred_element_type=jnp.float32) + b1b_ref[...]
    g = ha * jax.nn.sigmoid(hb)
    acc_ref[...] += jnp.dot(g.astype(w2_ref.dtype), w2_ref[...],
                            preferred_element_type=jnp.float32)

    @pl.when(h == pl.num_programs(1) - 1)
    def _():
        o_ref[...] = (acc_ref[...] + b2_ref[...]).astype(o_ref.dtype)


# ---------------------------------------------------------------------------
# Parameter prep (do once at model init, NOT per forward call)
# ---------------------------------------------------------------------------

def prepare_swiglu_params(w1, b1, w2, b2, *, compute_dtype=jnp.bfloat16):
    """Transpose PyTorch (out, in) weights to (in, out), split linear1 into separate
    gate / sigmoid matrices (contiguous lane-dense slabs when hidden-tiled), pad all
    feature dims to multiples of 128, cast weights to compute_dtype (biases stay f32).

    Padding invariant (keep if the layout changes): padded w1a columns AND padded b1a
    entries are zero, so padded gate lanes are exactly 0 and kill sigmoid(0)=0.5 from
    the padded b-path; padded w2 rows are zero as a second guard."""
    w1 = jnp.asarray(w1); b1 = jnp.asarray(b1)
    w2 = jnp.asarray(w2); b2 = jnp.asarray(b2)
    in_dim = w1.shape[1]
    out_dim = w2.shape[0]
    assert w1.shape == (2 * in_dim, in_dim) and b1.shape == (2 * in_dim,)
    assert w2.shape == (out_dim, in_dim) and b2.shape == (out_dim,)

    kp = _round_up(in_dim, 128)
    np_ = _round_up(out_dim, 128)
    pad_k = kp - in_dim
    pad_n = np_ - out_dim

    w1_t = w1.T                                                    # (in, 2*in)
    w1a = jnp.pad(w1_t[:, :in_dim], ((0, pad_k), (0, pad_k))).astype(compute_dtype)
    w1b = jnp.pad(w1_t[:, in_dim:], ((0, pad_k), (0, pad_k))).astype(compute_dtype)
    b1a = jnp.pad(b1[:in_dim], (0, pad_k)).reshape(1, kp).astype(jnp.float32)
    b1b = jnp.pad(b1[in_dim:], (0, pad_k)).reshape(1, kp).astype(jnp.float32)
    w2_t = jnp.pad(w2.T, ((0, pad_k), (0, pad_n))).astype(compute_dtype)
    b2_p = jnp.pad(b2, (0, pad_n)).reshape(1, np_).astype(jnp.float32)

    # TODO(synk): optional int8 (v5e/v6e) / fp8 (v7x) weight quantization with
    # per-channel scales applied after the f32 accumulate.
    return dict(w1a=w1a, w1b=w1b, b1a=b1a, b1b=b1b, w2=w2_t, b2=b2_p,
                in_dim=in_dim, out_dim=out_dim, kp=kp, np=np_)


# ---------------------------------------------------------------------------
# Forward
# ---------------------------------------------------------------------------

def swiglu_forward(x, params, *, tile_m=512, tile_h=512, out_dtype=None,
                   force_hidden_tiling=False):
    """x: (..., input_dim); params: output of prepare_swiglu_params."""
    in_dim, out_dim = params["in_dim"], params["out_dim"]
    kp, np_ = params["kp"], params["np"]
    assert x.shape[-1] == in_dim
    compute_dtype = params["w1a"].dtype
    if out_dtype is None:
        out_dtype = x.dtype

    lead_shape = x.shape[:-1]
    x2d = x.reshape(-1, in_dim)
    m = x2d.shape[0]

    # >=2 row-grid steps when possible so ("parallel", ...) shards across v7x's 2 TCs.
    tile_m_eff = max(16, min(tile_m, _round_up(pl.cdiv(m, 2), 16)))
    m_pad = _round_up(m, tile_m_eff)

    # Pad only when required (common case is a no-op); NO wrapper-side dtype cast.
    if m_pad != m or kp != in_dim:
        x2d = jnp.pad(x2d, ((0, m_pad - m), (0, kp - in_dim)))

    m_tiles = m_pad // tile_m_eff
    vmem_limit = _vmem_limit_bytes()

    w_itemsize = jnp.dtype(compute_dtype).itemsize
    weight_bytes = (2 * kp * kp + kp * np_) * w_itemsize
    stream_bytes = (2 * tile_m_eff * kp * x2d.dtype.itemsize          # x double-buffer
                    + 2 * tile_m_eff * np_ * jnp.dtype(out_dtype).itemsize  # out d-buf
                    + tile_m_eff * (2 * kp + np_) * 4)                 # f32 intermediates
    use_resident = (not force_hidden_tiling) and \
        (weight_bytes + stream_bytes < 0.7 * vmem_limit)

    cost = pl.CostEstimate(
        flops=2 * m_pad * kp * (2 * kp) + 2 * m_pad * kp * np_,
        transcendentals=m_pad * kp,  # sigmoid
        bytes_accessed=int(x2d.size * x2d.dtype.itemsize
                           + (1 if use_resident else m_tiles) * weight_bytes
                           + m_pad * np_ * jnp.dtype(out_dtype).itemsize),
    )

    args = (x2d, params["w1a"], params["w1b"], params["b1a"], params["b1b"],
            params["w2"], params["b2"])

    if use_resident:
        # Path A: weights whole-array resident in VMEM (single copy, no pipelining).
        vmem_whole = pl.BlockSpec(memory_space=pltpu.MemorySpace.VMEM)
        out2d = pl.pallas_call(
            swiglu_resident_kernel,
            out_shape=jax.ShapeDtypeStruct((m_pad, np_), out_dtype),
            grid_spec=pltpu.PrefetchScalarGridSpec(
                num_scalar_prefetch=0,
                grid=(m_tiles,),
                in_specs=[
                    pl.BlockSpec((tile_m_eff, kp), lambda i: (i, 0)),  # x row slab
                    vmem_whole,   # w1a
                    vmem_whole,   # w1b
                    vmem_whole,   # b1a
                    vmem_whole,   # b1b
                    vmem_whole,   # w2
                    vmem_whole,   # b2
                ],
                out_specs=pl.BlockSpec((tile_m_eff, np_), lambda i: (i, 0)),
            ),
            compiler_params=pltpu.CompilerParams(
                dimension_semantics=("parallel",),
                vmem_limit_bytes=vmem_limit,
            ),
            cost_estimate=cost,
        )(*args)
    else:
        # Path B: hidden-dim (kp) reduction axis, streamed weight slabs, f32 scratch acc.
        tile_h_eff = max(128, (min(tile_h, kp) // 128) * 128)
        while kp % tile_h_eff != 0:   # kp is a multiple of 128, so this terminates
            tile_h_eff -= 128
        h_tiles = kp // tile_h_eff

        out2d = pl.pallas_call(
            swiglu_hidden_tiled_kernel,
            out_shape=jax.ShapeDtypeStruct((m_pad, np_), out_dtype),
            grid_spec=pltpu.PrefetchScalarGridSpec(
                num_scalar_prefetch=0,
                grid=(m_tiles, h_tiles),
                in_specs=[
                    pl.BlockSpec((tile_m_eff, kp), lambda i, h: (i, 0)),   # x (const in h)
                    pl.BlockSpec((kp, tile_h_eff), lambda i, h: (0, h)),   # w1a slab
                    pl.BlockSpec((kp, tile_h_eff), lambda i, h: (0, h)),   # w1b slab
                    pl.BlockSpec((1, tile_h_eff), lambda i, h: (0, h)),    # b1a slab
                    pl.BlockSpec((1, tile_h_eff), lambda i, h: (0, h)),    # b1b slab
                    pl.BlockSpec((tile_h_eff, np_), lambda i, h: (h, 0)),  # w2 slab
                    pl.BlockSpec((1, np_), lambda i, h: (0, 0)),           # b2
                ],
                out_specs=pl.BlockSpec((tile_m_eff, np_), lambda i, h: (i, 0)),
                scratch_shapes=[pltpu.VMEM((tile_m_eff, np_), jnp.float32)],
            ),
            compiler_params=pltpu.CompilerParams(
                dimension_semantics=("parallel", "arbitrary"),
                vmem_limit_bytes=vmem_limit,
            ),
            cost_estimate=cost,
        )(*args)

    return out2d[:m, :out_dim].reshape(*lead_shape, out_dim)


# ---------------------------------------------------------------------------
# Self-test
# ---------------------------------------------------------------------------

def _reference(x, w1, b1, w2, b2):
    x_proj = x @ w1.T + b1
    x_a, x_b = jnp.split(x_proj, 2, axis=-1)
    return (x_a * jax.nn.sigmoid(x_b)) @ w2.T + b2


if __name__ == "__main__":
    key = jax.random.PRNGKey(0)

    # ---- Test 1: input_dim=128, VMEM-resident weight path --------------------
    input_dim, output_dim = 128, 128
    batch, seq = 2, 8
    kx, kw1, kb1, kw2, kb2, key = jax.random.split(key, 6)
    x = jax.random.normal(kx, (batch, seq, input_dim), dtype=jnp.float32)
    w1 = jax.random.normal(kw1, (2 * input_dim, input_dim), dtype=jnp.float32) * 0.1
    b1 = jax.random.normal(kb1, (2 * input_dim,), dtype=jnp.float32) * 0.1
    w2 = jax.random.normal(kw2, (output_dim, input_dim), dtype=jnp.float32) * 0.1
    b2 = jax.random.normal(kb2, (output_dim,), dtype=jnp.float32) * 0.1
    ref = _reference(x, w1, b1, w2, b2)

    # f32 compute: strict check
    params_f32 = prepare_swiglu_params(w1, b1, w2, b2, compute_dtype=jnp.float32)
    out_f32 = jax.block_until_ready(swiglu_forward(x, params_f32))
    assert out_f32.shape == (batch, seq, output_dim)
    assert jnp.allclose(out_f32, ref, atol=1e-4, rtol=1e-4), "f32 mismatch vs reference"

    # bf16 compute + bf16 output (production config)
    params_bf16 = prepare_swiglu_params(w1, b1, w2, b2, compute_dtype=jnp.bfloat16)
    out_bf16 = jax.block_until_ready(
        swiglu_forward(x, params_bf16, out_dtype=jnp.bfloat16))
    assert out_bf16.shape == (batch, seq, output_dim)
    assert jnp.allclose(out_bf16.astype(jnp.float32), ref, atol=1e-1, rtol=1e-1), \
        "bf16 mismatch vs reference"

    # ---- Test 2: exercise the hidden-dim-tiled accumulator path --------------
    input_dim2, output_dim2 = 256, 192
    batch2, seq2 = 4, 8
    kx, kw1, kb1, kw2, kb2, key = jax.random.split(key, 6)
    x2 = jax.random.normal(kx, (batch2, seq2, input_dim2), dtype=jnp.float32)
    w1_2 = jax.random.normal(kw1, (2 * input_dim2, input_dim2), dtype=jnp.float32) * 0.1
    b1_2 = jax.random.normal(kb1, (2 * input_dim2,), dtype=jnp.float32) * 0.1
    w2_2 = jax.random.normal(kw2, (output_dim2, input_dim2), dtype=jnp.float32) * 0.1
    b2_2 = jax.random.normal(kb2, (output_dim2,), dtype=jnp.float32) * 0.1
    ref2 = _reference(x2, w1_2, b1_2, w2_2, b2_2)

    params2 = prepare_swiglu_params(w1_2, b1_2, w2_2, b2_2, compute_dtype=jnp.float32)
    out2 = jax.block_until_ready(
        swiglu_forward(x2, params2, tile_h=128, force_hidden_tiling=True))
    assert out2.shape == (batch2, seq2, output_dim2)
    assert jnp.allclose(out2, ref2, atol=2e-3, rtol=2e-3), \
        "hidden-tiled mismatch vs reference"

    print("KERNEL_OK")
</pallas_src>

<mosaic_0001>
module attributes {stable_mosaic.version = 11 : i64} {
  func.func @swiglu_resident_kernel(%arg0: i32, %arg1: memref<16x128xf32, #tpu.memory_space<vmem>>, %arg2: memref<128x128xf32, #tpu.memory_space<vmem>>, %arg3: memref<128x128xf32, #tpu.memory_space<vmem>>, %arg4: memref<1x128xf32, #tpu.memory_space<vmem>>, %arg5: memref<1x128xf32, #tpu.memory_space<vmem>>, %arg6: memref<128x128xf32, #tpu.memory_space<vmem>>, %arg7: memref<1x128xf32, #tpu.memory_space<vmem>>, %arg8: memref<16x128xf32, #tpu.memory_space<vmem>>) attributes {dimension_semantics = [#tpu.dimension_semantics<parallel>], iteration_bounds = array<i64: 1>, scalar_prefetch = 0 : i64, scratch_operands = 0 : i64, tpu.core_type = #tpu.core_type<tc>, window_params = [{transform_indices = @transform_0, window_bounds = array<i64: 16, 128>}, {pipeline_mode = #tpu.pipeline_mode<synchronous>, transform_indices = @transform_1, window_bounds = array<i64: 128, 128>}, {pipeline_mode = #tpu.pipeline_mode<synchronous>, transform_indices = @transform_2, window_bounds = array<i64: 128, 128>}, {pipeline_mode = #tpu.pipeline_mode<synchronous>, transform_indices = @transform_3, window_bounds = array<i64: 1, 128>}, {pipeline_mode = #tpu.pipeline_mode<synchronous>, transform_indices = @transform_4, window_bounds = array<i64: 1, 128>}, {pipeline_mode = #tpu.pipeline_mode<synchronous>, transform_indices = @transform_5, window_bounds = array<i64: 128, 128>}, {pipeline_mode = #tpu.pipeline_mode<synchronous>, transform_indices = @transform_6, window_bounds = array<i64: 1, 128>}, {transform_indices = @transform_7, window_bounds = array<i64: 16, 128>}]} {
    %c0 = arith.constant 0 : index
    %c0_0 = arith.constant 0 : index
    %0 = vector.load %arg1[%c0, %c0_0] : memref<16x128xf32, #tpu.memory_space<vmem>>, vector<16x128xf32>
    %c0_1 = arith.constant 0 : index
    %c0_2 = arith.constant 0 : index
    %1 = vector.load %arg2[%c0_1, %c0_2] : memref<128x128xf32, #tpu.memory_space<vmem>>, vector<128x128xf32>
    %cst = arith.constant dense<0.000000e+00> : vector<16x128xf32>
    %2 = tpu.matmul %0, %1, %cst {dimension_numbers = #tpu.dot_dimension_numbers<[1], [0], [0], [1], [0, 0, 1, 1], [], []>} : vector<16x128xf32>, vector<128x128xf32>, vector<16x128xf32> -> vector<16x128xf32>
    %c0_3 = arith.constant 0 : index
    %c0_4 = arith.constant 0 : index
    %3 = vector.load %arg4[%c0_3, %c0_4] : memref<1x128xf32, #tpu.memory_space<vmem>>, vector<1x128xf32>
    %4 = vector.broadcast %3 : vector<1x128xf32> to vector<16x128xf32>
    %5 = arith.addf %2, %4 : vector<16x128xf32>
    %c0_5 = arith.constant 0 : index
    %c0_6 = arith.constant 0 : index
    %6 = vector.load %arg3[%c0_5, %c0_6] : memref<128x128xf32, #tpu.memory_space<vmem>>, vector<128x128xf32>
    %cst_7 = arith.constant dense<0.000000e+00> : vector<16x128xf32>
    %7 = tpu.matmul %0, %6, %cst_7 {dimension_numbers = #tpu.dot_dimension_numbers<[1], [0], [0], [1], [0, 0, 1, 1], [], []>} : vector<16x128xf32>, vector<128x128xf32>, vector<16x128xf32> -> vector<16x128xf32>
    %c0_8 = arith.constant 0 : index
    %c0_9 = arith.constant 0 : index
    %8 = vector.load %arg5[%c0_8, %c0_9] : memref<1x128xf32, #tpu.memory_space<vmem>>, vector<1x128xf32>
    %9 = vector.broadcast %8 : vector<1x128xf32> to vector<16x128xf32>
    %10 = arith.addf %7, %9 : vector<16x128xf32>
    %11 = arith.negf %10 : vector<16x128xf32>
    %12 = math.exp %11 : vector<16x128xf32>
    %cst_10 = arith.constant 1.000000e+00 : f32
    %13 = vector.broadcast %cst_10 : f32 to vector<16x128xf32>
    %14 = arith.addf %13, %12 : vector<16x128xf32>
    %15 = arith.divf %13, %14 : vector<16x128xf32>
    %16 = arith.mulf %5, %15 : vector<16x128xf32>
    %c0_11 = arith.constant 0 : index
    %c0_12 = arith.constant 0 : index
    %17 = vector.load %arg6[%c0_11, %c0_12] : memref<128x128xf32, #tpu.memory_space<vmem>>, vector<128x128xf32>
    %cst_13 = arith.constant dense<0.000000e+00> : vector<16x128xf32>
    %18 = tpu.matmul %16, %17, %cst_13 {dimension_numbers = #tpu.dot_dimension_numbers<[1], [0], [0], [1], [0, 0, 1, 1], [], []>} : vector<16x128xf32>, vector<128x128xf32>, vector<16x128xf32> -> vector<16x128xf32>
    %c0_14 = arith.constant 0 : index
    %c0_15 = arith.constant 0 : index
    %19 = vector.load %arg7[%c0_14, %c0_15] : memref<1x128xf32, #tpu.memory_space<vmem>>, vector<1x128xf32>
    %20 = vector.broadcast %19 : vector<1x128xf32> to vector<16x128xf32>
    %21 = arith.addf %18, %20 : vector<16x128xf32>
    %c0_16 = arith.constant 0 : index
    %c0_17 = arith.constant 0 : index
    %22 = vector.load %arg8[%c0_16, %c0_17] : memref<16x128xf32, #tpu.memory_space<vmem>>, vector<16x128xf32>
    tpu.vector_store %arg8[%c0_16, %c0_17], %21 {strides = array<i32>} : memref<16x128xf32, #tpu.memory_space<vmem>>, vector<16x128xf32>,
    return
  }
  func.func @transform_0(%arg0: i32) -> (i32, i32) {
    %c0_i32 = arith.constant 0 : i32
    %c0_i32_0 = arith.constant 0 : i32
    return %arg0, %c0_i32 : i32, i32
  }
  func.func @transform_1(%arg0: i32) -> (i32, i32) {
    %c0_i32 = arith.constant 0 : i32
    %c0_i32_0 = arith.constant 0 : i32
    %c0_i32_1 = arith.constant 0 : i32
    return %c0_i32, %c0_i32_0 : i32, i32
  }
  func.func @transform_2(%arg0: i32) -> (i32, i32) {
    %c0_i32 = arith.constant 0 : i32
    %c0_i32_0 = arith.constant 0 : i32
    %c0_i32_1 = arith.constant 0 : i32
    return %c0_i32, %c0_i32_0 : i32, i32
  }
  func.func @transform_3(%arg0: i32) -> (i32, i32) {
    %c0_i32 = arith.constant 0 : i32
    %c0_i32_0 = arith.constant 0 : i32
    %c0_i32_1 = arith.constant 0 : i32
    return %c0_i32, %c0_i32_0 : i32, i32
  }
  func.func @transform_4(%arg0: i32) -> (i32, i32) {
    %c0_i32 = arith.constant 0 : i32
    %c0_i32_0 = arith.constant 0 : i32
    %c0_i32_1 = arith.constant 0 : i32
    return %c0_i32, %c0_i32_0 : i32, i32
  }
  func.func @transform_5(%arg0: i32) -> (i32, i32) {
    %c0_i32 = arith.constant 0 : i32
    %c0_i32_0 = arith.constant 0 : i32
    %c0_i32_1 = arith.constant 0 : i32
    return %c0_i32, %c0_i32_0 : i32, i32
  }
  func.func @transform_6(%arg0: i32) -> (i32, i32) {
    %c0_i32 = arith.constant 0 : i32
    %c0_i32_0 = arith.constant 0 : i32
    %c0_i32_1 = arith.constant 0 : i32
    return %c0_i32, %c0_i32_0 : i32, i32
  }
  func.func @transform_7(%arg0: i32) -> (i32, i32) {
    %c0_i32 = arith.constant 0 : i32
    %c0_i32_0 = arith.constant 0 : i32
    return %arg0, %c0_i32 : i32, i32
  }
}

</mosaic_0001>

<llo_original>
// kernel: tpu_custom_call.1
$region0: #{tpu_custom_call.1}
  #allocation0 [shape = 'u32[]', space=smem, size = 0x4, offset = 0x4, fixed_abs, tag = 'smem constant byte address 0x4 - core index']
  #allocation1 [shape = 'u32[72,128]{1,0:T(1,128)}', space=vmem, size = 0x9000, scoped, tag = 'internal scratch']
  %s0 = inlined_call_operand.hbm [shape: f32[16,128], index: 0, kind: input, shape index: {}]
  %s1 = inlined_call_operand.hbm [shape: f32[128,128], index: 1, kind: input, shape index: {}]
  %s2 = inlined_call_operand.hbm [shape: f32[128,128], index: 2, kind: input, shape index: {}]
  %s3 = inlined_call_operand.vmem [shape: f32[1,128], index: 3, kind: input, shape index: {}]
  %s4 = inlined_call_operand.vmem [shape: f32[1,128], index: 4, kind: input, shape index: {}]
  %s5 = inlined_call_operand.hbm [shape: f32[128,128], index: 5, kind: input, shape index: {}]
  %s6 = inlined_call_operand.vmem [shape: f32[1,128], index: 6, kind: input, shape index: {}]
  %s7 = inlined_call_operand.hbm [shape: f32[16,128], index: 7, kind: output, shape index: {}]
  %s8 = sld [smem:[#allocation0]]
  $region54: #{tpu_custom_call.1} parent=0
    _
  %s10 = ssub.s32 1, %s8
  %s11 = scalar_select 0, %s10, %s8
  $region1: #{tpu_custom_call.1} parent=0
    #allocation2 [shape = 'u8[8192]{0}', space=vmem, size = 0x2000, scoped, tag = 'input window, operand 0, single buffered']
    #allocation3 [shape = 's32[1]{0}', space=sflag, size = 0x4, scoped, tag = 'scoped memory for tpu_custom_call.1']
    #allocation4 [shape = 's32[1]{0}', space=sflag, size = 0x4, scoped, tag = 'scoped memory for tpu_custom_call.1']
    #allocation5 [shape = 'u8[65536]{0}', space=vmem, size = 0x10000, scoped, tag = 'input window, operand 1, single buffered']
    #allocation6 [shape = 's32[1]{0}', space=sflag, size = 0x4, scoped, tag = 'scoped memory for tpu_custom_call.1']
    #allocation7 [shape = 'u8[65536]{0}', space=vmem, size = 0x10000, scoped, tag = 'input window, operand 2, single buffered']
    #allocation8 [shape = 'u8[65536]{0}', space=vmem, size = 0x10000, scoped, tag = 'input window, operand 5, single buffered']
    #allocation9 [shape = 's32[1]{0}', space=sflag, size = 0x4, scoped, tag = 'scoped memory for tpu_custom_call.1']
    #allocation10 [shape = 'u8[8192]{0}', space=vmem, size = 0x2000, scoped, tag = 'output window, operand 0, single buffered']
    %12 = vsyncpa [#allocation3], 0
    %13 = vsyncpa [#allocation6], 0
    %14 = vsyncpa [#allocation9], 0
    %15 = vsyncpa [#allocation4], 0
    // Predicated region
    $region2: #{tpu_custom_call.1} parent=1 // pred_check
      _
    $region3: #{tpu_custom_call.1} parent=1 // pred_check_branch
      %17 = sbr.rel (0) target = $region5
    $region4: #{tpu_custom_call.1} parent=1 // pred_region
      %19 = vsyncadd [#allocation3], 0
      %s20 = sshll.u32 %s0, 4
      %s21 = int_to_ptr.hbm [resolvable:$true] %s20
      %s22 = sshll.u32 [#allocation2], 4
      %s23 = int_to_ptr.vmem [resolvable:$true] %s22
      %28 = dma.hbm_to_vmem [thread:$0]  %s21, 256, %s23, [#allocation3], 128, 128, 8
    $region5: #{tpu_custom_call.1} parent=1 // pred_fallthru
      _
    // Predicated region
    $region6: #{tpu_custom_call.1} parent=1 // pred_check
      _
    $region7: #{tpu_custom_call.1} parent=1 // pred_check_branch
      %30 = sbr.rel (0) target = $region9
    $region8: #{tpu_custom_call.1} parent=1 // pred_region
      %32 = vsyncadd [#allocation6], 0
      %s33 = sshll.u32 %s1, 4
      %s34 = int_to_ptr.hbm [resolvable:$true] %s33
      %s35 = sshll.u32 [#allocation5], 4
      %s36 = int_to_ptr.vmem [resolvable:$true] %s35
      %41 = dma.hbm_to_vmem [thread:$0]  %s34, 2048, %s36, [#allocation6], 128, 128, 8
    $region9: #{tpu_custom_call.1} parent=1 // pred_fallthru
      _
    // Predicated region
    $region10: #{tpu_custom_call.1} parent=1 // pred_check
      _
    $region11: #{tpu_custom_call.1} parent=1 // pred_check_branch
      %43 = sbr.rel (0) target = $region13
    $region12: #{tpu_custom_call.1} parent=1 // pred_region
      %45 = vsyncadd [#allocation6], 0
      %s46 = sshll.u32 %s2, 4
      %s47 = int_to_ptr.hbm [resolvable:$true] %s46
      %s48 = sshll.u32 [#allocation7], 4
      %s49 = int_to_ptr.vmem [resolvable:$true] %s48
      %54 = dma.hbm_to_vmem [thread:$0]  %s47, 2048, %s49, [#allocation6], 128, 128, 8
    $region13: #{tpu_custom_call.1} parent=1 // pred_fallthru
      _
    // Predicated region
    $region14: #{tpu_custom_call.1} parent=1 // pred_check
      _
    $region15: #{tpu_custom_call.1} parent=1 // pred_check_branch
      %56 = sbr.rel (0) target = $region17
    $region16: #{tpu_custom_call.1} parent=1 // pred_region
      _
    $region17: #{tpu_custom_call.1} parent=1 // pred_fallthru
      _
    // Predicated region
    $region18: #{tpu_custom_call.1} parent=1 // pred_check
      _
    $region19: #{tpu_custom_call.1} parent=1 // pred_check_branch
      %58 = sbr.rel (0) target = $region21
    $region20: #{tpu_custom_call.1} parent=1 // pred_region
      _
    $region21: #{tpu_custom_call.1} parent=1 // pred_fallthru
      _
    // Predicated region
    $region22: #{tpu_custom_call.1} parent=1 // pred_check
      _
    $region23: #{tpu_custom_call.1} parent=1 // pred_check_branch
      %60 = sbr.rel (0) target = $region25
    $region24: #{tpu_custom_call.1} parent=1 // pred_region
      %62 = vsyncadd [#allocation9], 0
      %s63 = sshll.u32 %s5, 4
      %s64 = int_to_ptr.hbm [resolvable:$true] %s63
      %s65 = sshll.u32 [#allocation8], 4
      %s66 = int_to_ptr.vmem [resolvable:$true] %s65
      %71 = dma.hbm_to_vmem [thread:$0]  %s64, 2048, %s66, [#allocation9], 128, 128, 8
    $region25: #{tpu_custom_call.1} parent=1 // pred_fallthru
      _
    // Predicated region
    $region26: #{tpu_custom_call.1} parent=1 // pred_check
      _
    $region27: #{tpu_custom_call.1} parent=1 // pred_check_branch
      %73 = sbr.rel (0) target = $region29
    $region28: #{tpu_custom_call.1} parent=1 // pred_region
      _
    $region29: #{tpu_custom_call.1} parent=1 // pred_fallthru
      _
    // Predicated region
    $region30: #{tpu_custom_call.1} parent=1 // pred_check
      _
    $region31: #{tpu_custom_call.1} parent=1 // pred_check_branch
      %75 = sbr.rel (0) target = $region33
    $region32: #{tpu_custom_call.1} parent=1 // pred_region
      %77 = dma.done [#allocation3], 256
    $region33: #{tpu_custom_call.1} parent=1 // pred_fallthru
      _
    // Predicated region
    $region34: #{tpu_custom_call.1} parent=1 // pred_check
      _
    $region35: #{tpu_custom_call.1} parent=1 // pred_check_branch
      %79 = sbr.rel (0) target = $region37
    $region36: #{tpu_custom_call.1} parent=1 // pred_region
      %81 = dma.done [#allocation6], 2048
    $region37: #{tpu_custom_call.1} parent=1 // pred_fallthru
      _
    // Predicated region
    $region38: #{tpu_custom_call.1} parent=1 // pred_check
      _
    $region39: #{tpu_custom_call.1} parent=1 // pred_check_branch
      %83 = sbr.rel (0) target = $region41
    $region40: #{tpu_custom_call.1} parent=1 // pred_region
      %85 = dma.done [#allocation6], 2048
    $region41: #{tpu_custom_call.1} parent=1 // pred_fallthru
      _
    // Predicated region
    $region42: #{tpu_custom_call.1} parent=1 // pred_check
      _
    $region43: #{tpu_custom_call.1} parent=1 // pred_check_branch
      %87 = sbr.rel (0) target = $region45
    $region44: #{tpu_custom_call.1} parent=1 // pred_region
      %89 = dma.done [#allocation9], 2048
    $region45: #{tpu_custom_call.1} parent=1 // pred_fallthru
      _
    %v90 = vld [vmem:[#allocation2] sm:$0xff]
    %v91 = vld [vmem:[#allocation2 + $0x8] sm:$0xff]
    %v92 = vld [vmem:[#allocation5] sm:$0xff]
    %v93 = vld [vmem:[#allocation5 + $0x8] sm:$0xff]
    %v94 = vld [vmem:[#allocation5 + $0x10] sm:$0xff]
    %v95 = vld [vmem:[#allocation5 + $0x18] sm:$0xff]
    %v96 = vld [vmem:[#allocation5 + $0x20] sm:$0xff]
    %v97 = vld [vmem:[#allocation5 + $0x28] sm:$0xff]
    %v98 = vld [vmem:[#allocation5 + $0x30] sm:$0xff]
    %v99 = vld [vmem:[#allocation5 + $0x38] sm:$0xff]
    %v100 = vld [vmem:[#allocation5 + $0x40] sm:$0xff]
    %v101 = vld [vmem:[#allocation5 + $0x48] sm:$0xff]
    %v102 = vld [vmem:[#allocation5 + $0x50] sm:$0xff]
    %v103 = vld [vmem:[#allocation5 + $0x58] sm:$0xff]
    %v104 = vld [vmem:[#allocation5 + $0x60] sm:$0xff]
    %v105 = vld [vmem:[#allocation5 + $0x68] sm:$0xff]
    %v106 = vld [vmem:[#allocation5 + $0x70] sm:$0xff]
    %v107 = vld [vmem:[#allocation5 + $0x78] sm:$0xff]
    %v108 = vld [vmem:[%s3] sm:$0x1]
    %v110 = vperm.slane %v108, 0
    %112 = vmatpush.msra.mxu0 %v107
    %113 = vmatpush.msra.mxu0 %v106
    %114 = vmatpush.msra.mxu0 %v105
    %115 = vmatpush.msra.mxu0 %v104
    %116 = vmatpush.msra.mxu0 %v103
    %117 = vmatpush.msra.mxu0 %v102
    %118 = vmatpush.msra.mxu0 %v101
    %119 = vmatpush.msra.mxu0 %v100
    %120 = vmatpush.msra.mxu0 %v99
    %121 = vmatpush.msra.mxu0 %v98
    %122 = vmatpush.msra.mxu0 %v97
    %123 = vmatpush.msra.mxu0 %v96
    %124 = vmatpush.msra.mxu0 %v95
    %125 = vmatpush.msra.mxu0 %v94
    %126 = vmatpush.msra.mxu0 %v93
    %127 = vmatpush.msra.mxu0 %v92
    %128 = vmatmul.f32.gmra.mxu0 %v90
    %v129 = vpop.f32.mrf.mxu0
    %v130 = vadd.f32 %v110, %v129
    %131 = vmatmul.f32.gmra.mxu0 %v91
    %v132 = vpop.f32.mrf.mxu0
    %v133 = vadd.f32 %v110, %v132
    %134 = vdwg.mxu0
    %v135 = vld [vmem:[#allocation7] sm:$0xff]
    %v136 = vld [vmem:[#allocation7 + $0x8] sm:$0xff]
    %v137 = vld [vmem:[#allocation7 + $0x10] sm:$0xff]
    %v138 = vld [vmem:[#allocation7 + $0x18] sm:$0xff]
    %v139 = vld [vmem:[#allocation7 + $0x20] sm:$0xff]
    %v140 = vld [vmem:[#allocation7 + $0x28] sm:$0xff]
    %v141 = vld [vmem:[#allocation7 + $0x30] sm:$0xff]
    %v142 = vld [vmem:[#allocation7 + $0x38] sm:$0xff]
    %v143 = vld [vmem:[#allocation7 + $0x40] sm:$0xff]
    %v144 = vld [vmem:[#allocation7 + $0x48] sm:$0xff]
    %v145 = vld [vmem:[#allocation7 + $0x50] sm:$0xff]
    %v146 = vld [vmem:[#allocation7 + $0x58] sm:$0xff]
    %v147 = vld [vmem:[#allocation7 + $0x60] sm:$0xff]
    %v148 = vld [vmem:[#allocation7 + $0x68] sm:$0xff]
    %v149 = vld [vmem:[#allocation7 + $0x70] sm:$0xff]
    %v150 = vld [vmem:[#allocation7 + $0x78] sm:$0xff]
    %v151 = vld [vmem:[%s4] sm:$0x1]
    %v153 = vperm.slane %v151, 0
    %155 = vmatpush.msra.mxu0 %v150
    %156 = vmatpush.msra.mxu0 %v149
    %157 = vmatpush.msra.mxu0 %v148
    %158 = vmatpush.msra.mxu0 %v147
    %159 = vmatpush.msra.mxu0 %v146
    %160 = vmatpush.msra.mxu0 %v145
    %161 = vmatpush.msra.mxu0 %v144
    %162 = vmatpush.msra.mxu0 %v143
    %163 = vmatpush.msra.mxu0 %v142
    %164 = vmatpush.msra.mxu0 %v141
    %165 = vmatpush.msra.mxu0 %v140
    %166 = vmatpush.msra.mxu0 %v139
    %167 = vmatpush.msra.mxu0 %v138
    %168 = vmatpush.msra.mxu0 %v137
    %169 = vmatpush.msra.mxu0 %v136
    %170 = vmatpush.msra.mxu0 %v135
    %171 = vmatmul.f32.gmra.mxu0 %v90
    %v172 = vpop.f32.mrf.mxu0
    %v173 = vadd.f32 %v153, %v172
    %174 = vmatmul.f32.gmra.mxu0 %v91
    %v175 = vpop.f32.mrf.mxu0
    %v176 = vadd.f32 %v153, %v175
    %177 = vdwg.mxu0
    %v178 = vxor.u32 %v173, 2147483648
    %v179 = vxor.u32 %v176, 2147483648
    %v180 = vmul.f32 %v178, 1.442695
    %v181 = vpow.pop %v180
    %v182 = vmul.f32 %v179, 1.442695
    %v183 = vpow.pop %v182
    %v184 = vadd.f32 %v181, 1.0
    %v185 = vadd.f32 %v183, 1.0
    %v186 = vrcp.pop %v184
    %v187 = vmul.f32 %v184, %v186
    %v188 = vsub.f32 1.0, %v187
    %v189 = vmul.f32 %v186, %v188
    %v190 = vadd.f32 %v186, %v189
    %vm191 = vweird.f32 %v184
    %vm192 = vweird.f32 %v186
    %vm193 = vmor %vm191, %vm192
    %v194 = vsel %vm193, %v186, %v190
    %v195 = vand.u32 2147483647, %v184
    %vm196 = vcmp.eq.f32.partialorder %v195, 8.507059e+37
    %v197 = vand.u32 %v184, 2147483648
    %v198 = vor.u32 1.1754944e-38, %v197
    %v199 = vsel %vm196, %v198, %v194
    %v200 = vmul.f32 1.0, %v199
    %v201 = vrcp.pop %v185
    %v202 = vmul.f32 %v185, %v201
    %v203 = vsub.f32 1.0, %v202
    %v204 = vmul.f32 %v201, %v203
    %v205 = vadd.f32 %v201, %v204
    %vm206 = vweird.f32 %v185
    %vm207 = vweird.f32 %v201
    %vm208 = vmor %vm206, %vm207
    %v209 = vsel %vm208, %v201, %v205
    %v210 = vand.u32 2147483647, %v185
    %vm211 = vcmp.eq.f32.partialorder %v210, 8.507059e+37
    %v212 = vand.u32 %v185, 2147483648
    %v213 = vor.u32 1.1754944e-38, %v212
    %v214 = vsel %vm211, %v213, %v209
    %v215 = vmul.f32 1.0, %v214
    %v216 = vmul.f32 %v130, %v200
    %v217 = vmul.f32 %v133, %v215
    %v218 = vld [vmem:[#allocation8] sm:$0xff]
    %v219 = vld [vmem:[#allocation8 + $0x8] sm:$0xff]
    %v220 = vld [vmem:[#allocation8 + $0x10] sm:$0xff]
    %v221 = vld [vmem:[#allocation8 + $0x18] sm:$0xff]
    %v222 = vld [vmem:[#allocation8 + $0x20] sm:$0xff]
    %v223 = vld [vmem:[#allocation8 + $0x28] sm:$0xff]
    %v224 = vld [vmem:[#allocation8 + $0x30] sm:$0xff]
    %v225 = vld [vmem:[#allocation8 + $0x38] sm:$0xff]
    %v226 = vld [vmem:[#allocation8 + $0x40] sm:$0xff]
    %v227 = vld [vmem:[#allocation8 + $0x48] sm:$0xff]
    %v228 = vld [vmem:[#allocation8 + $0x50] sm:$0xff]
    %v229 = vld [vmem:[#allocation8 + $0x58] sm:$0xff]
    %v230 = vld [vmem:[#allocation8 + $0x60] sm:$0xff]
    %v231 = vld [vmem:[#allocation8 + $0x68] sm:$0xff]
    %v232 = vld [vmem:[#allocation8 + $0x70] sm:$0xff]
    %v233 = vld [vmem:[#allocation8 + $0x78] sm:$0xff]
    %v234 = vld [vmem:[%s6] sm:$0x1]
    %v236 = vperm.slane %v234, 0
    %238 = vmatpush.msra.mxu0 %v233
    %239 = vmatpush.msra.mxu0 %v232
    %240 = vmatpush.msra.mxu0 %v231
    %241 = vmatpush.msra.mxu0 %v230
    %242 = vmatpush.msra.mxu0 %v229
    %243 = vmatpush.msra.mxu0 %v228
    %244 = vmatpush.msra.mxu0 %v227
    %245 = vmatpush.msra.mxu0 %v226
    %246 = vmatpush.msra.mxu0 %v225
    %247 = vmatpush.msra.mxu0 %v224
    %248 = vmatpush.msra.mxu0 %v223
    %249 = vmatpush.msra.mxu0 %v222
    %250 = vmatpush.msra.mxu0 %v221
    %251 = vmatpush.msra.mxu0 %v220
    %252 = vmatpush.msra.mxu0 %v219
    %253 = vmatpush.msra.mxu0 %v218
    %254 = vmatmul.f32.gmra.mxu0 %v216
    %v255 = vpop.f32.mrf.mxu0
    %v256 = vadd.f32 %v236, %v255
    %257 = vmatmul.f32.gmra.mxu0 %v217
    %v258 = vpop.f32.mrf.mxu0
    %v259 = vadd.f32 %v236, %v258
    %260 = vdwg.mxu0
    %261 = vst [vmem:[#allocation10] sm:$0xff] %v256
    %262 = vst [vmem:[#allocation10 + $0x8] sm:$0xff] %v259
    // Predicated region
    $region46: #{tpu_custom_call.1} parent=1 // pred_check
      _
    $region47: #{tpu_custom_call.1} parent=1 // pred_check_branch
      %264 = sbr.rel (0) target = $region49
    $region48: #{tpu_custom_call.1} parent=1 // pred_region
      %266 = vsyncadd [#allocation4], 0
      %s267 = sshll.u32 [#allocation10], 4
      %s268 = int_to_ptr.vmem [resolvable:$true] %s267
      %s269 = sshll.u32 %s7, 4
      %s270 = int_to_ptr.hbm [resolvable:$true] %s269
      %275 = dma.vmem_to_hbm [thread:$0]  %s268, 256, %s270, [#allocation4], 128, 128, 8
    $region49: #{tpu_custom_call.1} parent=1 // pred_fallthru
      _
    // Predicated region
    $region50: #{tpu_custom_call.1} parent=1 // pred_check
      _
    $region51: #{tpu_custom_call.1} parent=1 // pred_check_branch
      %277 = sbr.rel (0) target = $region53
    $region52: #{tpu_custom_call.1} parent=1 // pred_region
      %279 = dma.done [#allocation4], 256
    $region53: #{tpu_custom_call.1} parent=1 // pred_fallthru
      _
    %280 = vsyncpa [#allocation3], 1
    %281 = vsyncpa [#allocation6], 1
    %282 = vsyncpa [#allocation9], 1
    %283 = vsyncpa [#allocation4], 1

</llo_original>
